<compile_context>
chip_gen: v6e
topology: v6e:2x2x1
jax: 0.10.0
libtpu: 0.0.40
codegen_flags: <defaults>
</compile_context>

<pallas_src>
import math

import jax
import jax.numpy as jnp
from jax.experimental import pallas as pl
from jax.experimental.pallas import tpu as pltpu

# ----------------------- model hyperparameters -----------------------------
INPUT_DIM = 14
OUTPUT_DIM = 6
HIDDEN_DIM = 32          # small hidden size for the example run
EXTRA_LAYERS = 1

BATCH = 2
SEQ = 8

LANE = 128                               # TPU lane width
N_LAYERS = EXTRA_LAYERS + 2              # in-layer + extra hidden + out-layer
BLOCK_ROWS = LANE + 8                    # 128 weight rows + 8-row bias block
SLAB_ROWS = N_LAYERS * BLOCK_ROWS        # total packed-parameter rows

assert INPUT_DIM <= LANE and HIDDEN_DIM <= LANE and OUTPUT_DIM <= LANE, (
    "lane-padding scheme assumes all feature widths fit in one 128-lane vreg")


def _round_up(n, m):
    return ((n + m - 1) // m) * m


# ------------------------------- kernel -------------------------------------
def ian_mlp_kernel(x_ref, p_ref, o_ref):
    """Fused MLP: N_LAYERS x (h @ W + b), ReLU on all but the last layer.

    x_ref: (M, 128) lane-padded input rows.
    p_ref: (SLAB_ROWS, 128) packed parameter slab; layer li occupies rows
           [li*BLOCK_ROWS, li*BLOCK_ROWS + 128) = W (zero-padded),
           row li*BLOCK_ROWS + 128 = bias (zero-padded), rest pad.
    o_ref: (M, 128) lane-dense output (real values in the first OUTPUT_DIM
           columns, zeros elsewhere); sliced in the wrapper.
    """
    h = x_ref[...]                                           # (M, 128) f32
    for li in range(N_LAYERS):                               # static unroll
        r0 = li * BLOCK_ROWS
        w = p_ref[r0:r0 + LANE, :]                           # (128, 128)
        b = p_ref[r0 + LANE:r0 + LANE + 1, :]                # (1, 128)
        h = jnp.dot(h, w, preferred_element_type=jnp.float32) + b
        if li < N_LAYERS - 1:
            h = jnp.maximum(h, 0.0)
    o_ref[...] = h


# --------------------------- wrapper / glue ----------------------------------
def _forward_impl(padded_input, param_slab):
    B, T, D = padded_input.shape
    N = B * T
    M = _round_up(max(N, 8), 8)                              # sublane-align rows

    # Flatten (B,T,D) -> (N,D) and lane/row pad to (M,128) once, inside jit.
    x = padded_input.reshape(N, D)
    x_pad = jnp.zeros((M, LANE), jnp.float32).at[:N, :D].set(x)

    real_flops = 2 * M * (INPUT_DIM * HIDDEN_DIM
                          + EXTRA_LAYERS * HIDDEN_DIM * HIDDEN_DIM
                          + HIDDEN_DIM * OUTPUT_DIM)
    bytes_acc = (M * LANE + SLAB_ROWS * LANE + M * LANE) * 4

    out_pad = pl.pallas_call(
        ian_mlp_kernel,
        out_shape=jax.ShapeDtypeStruct((M, LANE), jnp.float32),
        in_specs=[pl.BlockSpec(memory_space=pltpu.MemorySpace.VMEM),
                  pl.BlockSpec(memory_space=pltpu.MemorySpace.VMEM)],
        out_specs=pl.BlockSpec(memory_space=pltpu.MemorySpace.VMEM),
        cost_estimate=pl.CostEstimate(flops=real_flops,
                                      transcendentals=0,
                                      bytes_accessed=bytes_acc),
    )(x_pad, param_slab)

    # Slice the lane-dense output back to the real feature width.
    return out_pad[:N, :OUTPUT_DIM].reshape(B, T, OUTPUT_DIM)


ian_mlp_forward = jax.jit(_forward_impl)


# ------------------------ parameter initialization ---------------------------
def init_params(key):
    """PyTorch nn.Linear default init: U(-1/sqrt(fan_in), 1/sqrt(fan_in)).

    Returns a list of (W, b) pairs, one per Linear layer, derived from
    EXTRA_LAYERS so the packed kernel always matches the PyTorch spec.
    """
    dims = [INPUT_DIM] + [HIDDEN_DIM] * (EXTRA_LAYERS + 1) + [OUTPUT_DIM]
    keys = jax.random.split(key, len(dims) - 1)
    layers = []
    for k, fan_in, fan_out in zip(keys, dims[:-1], dims[1:]):
        k1, k2 = jax.random.split(k)
        bound = 1.0 / math.sqrt(fan_in)
        w = jax.random.uniform(k1, (fan_in, fan_out), jnp.float32, -bound, bound)
        b = jax.random.uniform(k2, (fan_out,), jnp.float32, -bound, bound)
        layers.append((w, b))
    return layers


def pack_params(layers):
    """Pack all (W, b) pairs into one (SLAB_ROWS, 128) lane-padded f32 slab."""
    assert len(layers) == N_LAYERS
    slab = jnp.zeros((SLAB_ROWS, LANE), jnp.float32)
    for li, (w, b) in enumerate(layers):
        r0 = li * BLOCK_ROWS
        fan_in, fan_out = w.shape
        slab = slab.at[r0:r0 + fan_in, :fan_out].set(w)
        slab = slab.at[r0 + LANE, :fan_out].set(b)
    return slab


# --------------------------- pure-JAX reference -------------------------------
def reference_forward(x, layers):
    h = x
    for i, (w, b) in enumerate(layers):
        h = h @ w + b
        if i < len(layers) - 1:
            h = jnp.maximum(h, 0.0)
    return h


# --------------------------------- main ---------------------------------------
if __name__ == "__main__":
    key = jax.random.PRNGKey(0)
    k_param, k_data = jax.random.split(key)

    layers = init_params(k_param)
    param_slab = pack_params(layers)
    padded_input = jax.random.normal(k_data, (BATCH, SEQ, INPUT_DIM), jnp.float32)

    out = ian_mlp_forward(padded_input, param_slab)
    out = jax.block_until_ready(out)

    ref = reference_forward(padded_input, layers)
    assert out.shape == (BATCH, SEQ, OUTPUT_DIM), out.shape
    assert jnp.allclose(out, ref, atol=1e-4, rtol=1e-4), (
        float(jnp.max(jnp.abs(out - ref))))

    print("KERNEL_OK")
</pallas_src>

<mosaic_0001>
module attributes {stable_mosaic.version = 11 : i64} {
  func.func @ian_mlp_kernel(%arg0: memref<16x128xf32, #tpu.memory_space<vmem>>, %arg1: memref<408x128xf32, #tpu.memory_space<vmem>>, %arg2: memref<16x128xf32, #tpu.memory_space<vmem>>) attributes {dimension_semantics = [], scalar_prefetch = 0 : i64, scratch_operands = 0 : i64, tpu.core_type = #tpu.core_type<tc>} {
    %c0 = arith.constant 0 : index
    %c0_0 = arith.constant 0 : index
    %0 = vector.load %arg0[%c0, %c0_0] : memref<16x128xf32, #tpu.memory_space<vmem>>, vector<16x128xf32>
    %c0_1 = arith.constant 0 : index
    %c0_2 = arith.constant 0 : index
    %1 = vector.load %arg1[%c0_1, %c0_2] : memref<408x128xf32, #tpu.memory_space<vmem>>, vector<128x128xf32>
    %c128 = arith.constant 128 : index
    %c0_3 = arith.constant 0 : index
    %2 = vector.load %arg1[%c128, %c0_3] : memref<408x128xf32, #tpu.memory_space<vmem>>, vector<1x128xf32>
    %cst = arith.constant dense<0.000000e+00> : vector<16x128xf32>
    %3 = tpu.matmul %0, %1, %cst {dimension_numbers = #tpu.dot_dimension_numbers<[1], [0], [0], [1], [0, 0, 1, 1], [], []>} : vector<16x128xf32>, vector<128x128xf32>, vector<16x128xf32> -> vector<16x128xf32>
    %4 = vector.broadcast %2 : vector<1x128xf32> to vector<16x128xf32>
    %5 = arith.addf %3, %4 : vector<16x128xf32>
    %cst_4 = arith.constant 0.000000e+00 : f32
    %6 = vector.broadcast %cst_4 : f32 to vector<16x128xf32>
    %7 = arith.maximumf %5, %6 : vector<16x128xf32>
    %c136 = arith.constant 136 : index
    %c0_5 = arith.constant 0 : index
    %8 = vector.load %arg1[%c136, %c0_5] : memref<408x128xf32, #tpu.memory_space<vmem>>, vector<128x128xf32>
    %c264 = arith.constant 264 : index
    %c0_6 = arith.constant 0 : index
    %9 = vector.load %arg1[%c264, %c0_6] : memref<408x128xf32, #tpu.memory_space<vmem>>, vector<1x128xf32>
    %cst_7 = arith.constant dense<0.000000e+00> : vector<16x128xf32>
    %10 = tpu.matmul %7, %8, %cst_7 {dimension_numbers = #tpu.dot_dimension_numbers<[1], [0], [0], [1], [0, 0, 1, 1], [], []>} : vector<16x128xf32>, vector<128x128xf32>, vector<16x128xf32> -> vector<16x128xf32>
    %11 = vector.broadcast %9 : vector<1x128xf32> to vector<16x128xf32>
    %12 = arith.addf %10, %11 : vector<16x128xf32>
    %cst_8 = arith.constant 0.000000e+00 : f32
    %13 = vector.broadcast %cst_8 : f32 to vector<16x128xf32>
    %14 = arith.maximumf %12, %13 : vector<16x128xf32>
    %c272 = arith.constant 272 : index
    %c0_9 = arith.constant 0 : index
    %15 = vector.load %arg1[%c272, %c0_9] : memref<408x128xf32, #tpu.memory_space<vmem>>, vector<128x128xf32>
    %c400 = arith.constant 400 : index
    %c0_10 = arith.constant 0 : index
    %16 = vector.load %arg1[%c400, %c0_10] : memref<408x128xf32, #tpu.memory_space<vmem>>, vector<1x128xf32>
    %cst_11 = arith.constant dense<0.000000e+00> : vector<16x128xf32>
    %17 = tpu.matmul %14, %15, %cst_11 {dimension_numbers = #tpu.dot_dimension_numbers<[1], [0], [0], [1], [0, 0, 1, 1], [], []>} : vector<16x128xf32>, vector<128x128xf32>, vector<16x128xf32> -> vector<16x128xf32>
    %18 = vector.broadcast %16 : vector<1x128xf32> to vector<16x128xf32>
    %19 = arith.addf %17, %18 : vector<16x128xf32>
    %c0_12 = arith.constant 0 : index
    %c0_13 = arith.constant 0 : index
    %20 = vector.load %arg2[%c0_12, %c0_13] : memref<16x128xf32, #tpu.memory_space<vmem>>, vector<16x128xf32>
    tpu.vector_store %arg2[%c0_12, %c0_13], %19 {strides = array<i32>} : memref<16x128xf32, #tpu.memory_space<vmem>>, vector<16x128xf32>,
    return
  }
}

</mosaic_0001>

<llo_original>
// kernel: _forward_impl.1
$region0: #{_forward_impl.1}
  #allocation0 [shape = 'u32[]', space=smem, size = 0x4, offset = 0x4, fixed_abs, tag = 'smem constant byte address 0x4 - core index']
  #allocation1 [shape = 'u32[144,128]{1,0:T(1,128)}', space=vmem, size = 0x12000, scoped, tag = 'internal scratch']
  %s0 = inlined_call_operand.vmem [shape: f32[16,128], index: 0, kind: input, shape index: {}]
  %s1 = inlined_call_operand.hbm [shape: f32[408,128], index: 1, kind: input, shape index: {}]
  %s2 = inlined_call_operand.vmem [shape: f32[16,128], index: 2, kind: output, shape index: {}]
  %s3 = sld [smem:[#allocation0]]
  $region22: #{_forward_impl.1} parent=0
    _
  %s5 = ssub.s32 1, %s3
  %s6 = scalar_select 0, %s5, %s3
  $region1: #{_forward_impl.1} parent=0
    #allocation2 [shape = 'u8[208896]{0}', space=vmem, size = 0x33000, scoped, tag = 'input window, operand 1, single buffered']
    #allocation3 [shape = 's32[1]{0}', space=sflag, size = 0x4, scoped, tag = 'scoped memory for _forward_impl.1']
    %7 = vsyncpa [#allocation3], 0
    // Predicated region
    $region2: #{_forward_impl.1} parent=1 // pred_check
      _
    $region3: #{_forward_impl.1} parent=1 // pred_check_branch
      %9 = sbr.rel (0) target = $region5
    $region4: #{_forward_impl.1} parent=1 // pred_region
      _
    $region5: #{_forward_impl.1} parent=1 // pred_fallthru
      _
    // Predicated region
    $region6: #{_forward_impl.1} parent=1 // pred_check
      _
    $region7: #{_forward_impl.1} parent=1 // pred_check_branch
      %11 = sbr.rel (0) target = $region9
    $region8: #{_forward_impl.1} parent=1 // pred_region
      %s13 = ssub.s32 6528, 6528
      %14 = vsyncadd [#allocation3], %s13
      %s15 = sshll.u32 [#allocation2], 4
      %s16 = int_to_ptr.vmem [resolvable:$true] %s15
      %21 = dma.hbm_to_vmem [thread:$0]  %s1, 6528, %s16, [#allocation3], 128, 128, 8
    $region9: #{_forward_impl.1} parent=1 // pred_fallthru
      _
    // Predicated region
    $region10: #{_forward_impl.1} parent=1 // pred_check
      _
    $region11: #{_forward_impl.1} parent=1 // pred_check_branch
      %23 = sbr.rel (0) target = $region13
    $region12: #{_forward_impl.1} parent=1 // pred_region
      %24 = dma.done [#allocation3], 6528
    $region13: #{_forward_impl.1} parent=1 // pred_fallthru
      _
    %v25 = vld [vmem:[%s0] sm:$0xff]
    %v26 = vld [vmem:[%s0 + $0x8] sm:$0xff]
    %v27 = vld [vmem:[#allocation2] sm:$0xff]
    %v28 = vld [vmem:[#allocation2 + $0x8] sm:$0xff]
    %v29 = vld [vmem:[#allocation2 + $0x10] sm:$0xff]
    %v30 = vld [vmem:[#allocation2 + $0x18] sm:$0xff]
    %v31 = vld [vmem:[#allocation2 + $0x20] sm:$0xff]
    %v32 = vld [vmem:[#allocation2 + $0x28] sm:$0xff]
    %v33 = vld [vmem:[#allocation2 + $0x30] sm:$0xff]
    %v34 = vld [vmem:[#allocation2 + $0x38] sm:$0xff]
    %v35 = vld [vmem:[#allocation2 + $0x40] sm:$0xff]
    %v36 = vld [vmem:[#allocation2 + $0x48] sm:$0xff]
    %v37 = vld [vmem:[#allocation2 + $0x50] sm:$0xff]
    %v38 = vld [vmem:[#allocation2 + $0x58] sm:$0xff]
    %v39 = vld [vmem:[#allocation2 + $0x60] sm:$0xff]
    %v40 = vld [vmem:[#allocation2 + $0x68] sm:$0xff]
    %v41 = vld [vmem:[#allocation2 + $0x70] sm:$0xff]
    %v42 = vld [vmem:[#allocation2 + $0x78] sm:$0xff]
    %v43 = vld [vmem:[#allocation2 + $0x80] sm:$0x1]
    %v44 = vlaneseq
    %v45 = vshrl.u32 %v44, 7
    %v46 = vsub.s32 0, %v45
    %v47 = vrot.slane %v43, %v46
    %48 = vmatprep.subr.mxu0 0.0
    %49 = vmatpush1.msra.mxu0 %v42
    %50 = vmatprep.subr.mxu0 0.0
    %51 = vmatpush1.msra.mxu0 %v41
    %52 = vmatprep.subr.mxu0 0.0
    %53 = vmatpush1.msra.mxu0 %v40
    %54 = vmatprep.subr.mxu0 0.0
    %55 = vmatpush1.msra.mxu0 %v39
    %56 = vmatprep.subr.mxu0 0.0
    %57 = vmatpush1.msra.mxu0 %v38
    %58 = vmatprep.subr.mxu0 0.0
    %59 = vmatpush1.msra.mxu0 %v37
    %60 = vmatprep.subr.mxu0 0.0
    %61 = vmatpush1.msra.mxu0 %v36
    %62 = vmatprep.subr.mxu0 0.0
    %63 = vmatpush1.msra.mxu0 %v35
    %64 = vmatprep.subr.mxu0 0.0
    %65 = vmatpush1.msra.mxu0 %v34
    %66 = vmatprep.subr.mxu0 0.0
    %67 = vmatpush1.msra.mxu0 %v33
    %68 = vmatprep.subr.mxu0 0.0
    %69 = vmatpush1.msra.mxu0 %v32
    %70 = vmatprep.subr.mxu0 0.0
    %71 = vmatpush1.msra.mxu0 %v31
    %72 = vmatprep.subr.mxu0 0.0
    %73 = vmatpush1.msra.mxu0 %v30
    %74 = vmatprep.subr.mxu0 0.0
    %75 = vmatpush1.msra.mxu0 %v29
    %76 = vmatprep.subr.mxu0 0.0
    %77 = vmatpush1.msra.mxu0 %v28
    %78 = vmatprep.subr.mxu0 0.0
    %79 = vmatpush1.msra.mxu0 %v27
    %80 = vmatprep.subr.mxu0 0.0
    %81 = vmatpush2.msra.mxu0 0.0
    %82 = vmatprep.subr.mxu0 0.0
    %83 = vmatpush2.msra.mxu0 0.0
    %84 = vmatprep.subr.mxu0 0.0
    %85 = vmatpush2.msra.mxu0 0.0
    %86 = vmatprep.subr.mxu0 0.0
    %87 = vmatpush2.msra.mxu0 0.0
    %88 = vmatprep.subr.mxu0 0.0
    %89 = vmatpush2.msra.mxu0 0.0
    %90 = vmatprep.subr.mxu0 0.0
    %91 = vmatpush2.msra.mxu0 0.0
    %92 = vmatprep.subr.mxu0 0.0
    %93 = vmatpush2.msra.mxu0 0.0
    %94 = vmatprep.subr.mxu0 0.0
    %95 = vmatpush2.msra.mxu0 0.0
    %96 = vmatprep.subr.mxu0 0.0
    %97 = vmatpush2.msra.mxu0 0.0
    %98 = vmatprep.subr.mxu0 0.0
    %99 = vmatpush2.msra.mxu0 0.0
    %100 = vmatprep.subr.mxu0 0.0
    %101 = vmatpush2.msra.mxu0 0.0
    %102 = vmatprep.subr.mxu0 0.0
    %103 = vmatpush2.msra.mxu0 0.0
    %104 = vmatprep.subr.mxu0 0.0
    %105 = vmatpush2.msra.mxu0 0.0
    %106 = vmatprep.subr.mxu0 0.0
    %107 = vmatpush2.msra.mxu0 0.0
    %108 = vmatprep.subr.mxu0 0.0
    %109 = vmatpush2.msra.mxu0 0.0
    %110 = vmatprep.subr.mxu0 0.0
    %111 = vmatpush2.msra.mxu0 0.0
    %112 = vmatprep.mubr.f32.mxu0 0.0
    %113 = vmatmul.mubr.f32.gmra.mxu0 %v25
    %v114 = vpop.f32.mrf.mxu0
    %v115 = vadd.f32 %v47, %v114
    %v116 = vpop.f32.mrf.mxu0
    %117 = vmatprep.mubr.f32.mxu0 0.0
    %118 = vmatmul.mubr.f32.gmra.mxu0 %v26
    %v119 = vpop.f32.mrf.mxu0
    %v120 = vadd.f32 %v47, %v119
    %v121 = vpop.f32.mrf.mxu0
    %122 = vdwg.mxu0
    %v123 = vmax.f32 %v115, 0.0
    %v124 = vmax.f32 %v120, 0.0
    %v125 = vld [vmem:[#allocation2 + $0x88] sm:$0xff]
    %v126 = vld [vmem:[#allocation2 + $0x90] sm:$0xff]
    %v127 = vld [vmem:[#allocation2 + $0x98] sm:$0xff]
    %v128 = vld [vmem:[#allocation2 + $0xa0] sm:$0xff]
    %v129 = vld [vmem:[#allocation2 + $0xa8] sm:$0xff]
    %v130 = vld [vmem:[#allocation2 + $0xb0] sm:$0xff]
    %v131 = vld [vmem:[#allocation2 + $0xb8] sm:$0xff]
    %v132 = vld [vmem:[#allocation2 + $0xc0] sm:$0xff]
    %v133 = vld [vmem:[#allocation2 + $0xc8] sm:$0xff]
    %v134 = vld [vmem:[#allocation2 + $0xd0] sm:$0xff]
    %v135 = vld [vmem:[#allocation2 + $0xd8] sm:$0xff]
    %v136 = vld [vmem:[#allocation2 + $0xe0] sm:$0xff]
    %v137 = vld [vmem:[#allocation2 + $0xe8] sm:$0xff]
    %v138 = vld [vmem:[#allocation2 + $0xf0] sm:$0xff]
    %v139 = vld [vmem:[#allocation2 + $0xf8] sm:$0xff]
    %v140 = vld [vmem:[#allocation2 + $0x100] sm:$0xff]
    %v141 = vld [vmem:[#allocation2 + $0x108] sm:$0x1]
    %v142 = vlaneseq
    %v143 = vshrl.u32 %v142, 7
    %v144 = vsub.s32 0, %v143
    %v145 = vrot.slane %v141, %v144
    %146 = vmatprep.subr.mxu0 0.0
    %147 = vmatpush1.msra.mxu0 %v140
    %148 = vmatprep.subr.mxu0 0.0
    %149 = vmatpush1.msra.mxu0 %v139
    %150 = vmatprep.subr.mxu0 0.0
    %151 = vmatpush1.msra.mxu0 %v138
    %152 = vmatprep.subr.mxu0 0.0
    %153 = vmatpush1.msra.mxu0 %v137
    %154 = vmatprep.subr.mxu0 0.0
    %155 = vmatpush1.msra.mxu0 %v136
    %156 = vmatprep.subr.mxu0 0.0
    %157 = vmatpush1.msra.mxu0 %v135
    %158 = vmatprep.subr.mxu0 0.0
    %159 = vmatpush1.msra.mxu0 %v134
    %160 = vmatprep.subr.mxu0 0.0
    %161 = vmatpush1.msra.mxu0 %v133
    %162 = vmatprep.subr.mxu0 0.0
    %163 = vmatpush1.msra.mxu0 %v132
    %164 = vmatprep.subr.mxu0 0.0
    %165 = vmatpush1.msra.mxu0 %v131
    %166 = vmatprep.subr.mxu0 0.0
    %167 = vmatpush1.msra.mxu0 %v130
    %168 = vmatprep.subr.mxu0 0.0
    %169 = vmatpush1.msra.mxu0 %v129
    %170 = vmatprep.subr.mxu0 0.0
    %171 = vmatpush1.msra.mxu0 %v128
    %172 = vmatprep.subr.mxu0 0.0
    %173 = vmatpush1.msra.mxu0 %v127
    %174 = vmatprep.subr.mxu0 0.0
    %175 = vmatpush1.msra.mxu0 %v126
    %176 = vmatprep.subr.mxu0 0.0
    %177 = vmatpush1.msra.mxu0 %v125
    %178 = vmatprep.subr.mxu0 0.0
    %179 = vmatpush2.msra.mxu0 0.0
    %180 = vmatprep.subr.mxu0 0.0
    %181 = vmatpush2.msra.mxu0 0.0
    %182 = vmatprep.subr.mxu0 0.0
    %183 = vmatpush2.msra.mxu0 0.0
    %184 = vmatprep.subr.mxu0 0.0
    %185 = vmatpush2.msra.mxu0 0.0
    %186 = vmatprep.subr.mxu0 0.0
    %187 = vmatpush2.msra.mxu0 0.0
    %188 = vmatprep.subr.mxu0 0.0
    %189 = vmatpush2.msra.mxu0 0.0
    %190 = vmatprep.subr.mxu0 0.0
    %191 = vmatpush2.msra.mxu0 0.0
    %192 = vmatprep.subr.mxu0 0.0
    %193 = vmatpush2.msra.mxu0 0.0
    %194 = vmatprep.subr.mxu0 0.0
    %195 = vmatpush2.msra.mxu0 0.0
    %196 = vmatprep.subr.mxu0 0.0
    %197 = vmatpush2.msra.mxu0 0.0
    %198 = vmatprep.subr.mxu0 0.0
    %199 = vmatpush2.msra.mxu0 0.0
    %200 = vmatprep.subr.mxu0 0.0
    %201 = vmatpush2.msra.mxu0 0.0
    %202 = vmatprep.subr.mxu0 0.0
    %203 = vmatpush2.msra.mxu0 0.0
    %204 = vmatprep.subr.mxu0 0.0
    %205 = vmatpush2.msra.mxu0 0.0
    %206 = vmatprep.subr.mxu0 0.0
    %207 = vmatpush2.msra.mxu0 0.0
    %208 = vmatprep.subr.mxu0 0.0
    %209 = vmatpush2.msra.mxu0 0.0
    %210 = vmatprep.mubr.f32.mxu0 0.0
    %211 = vmatmul.mubr.f32.gmra.mxu0 %v123
    %v212 = vpop.f32.mrf.mxu0
    %v213 = vadd.f32 %v145, %v212
    %v214 = vpop.f32.mrf.mxu0
    %215 = vmatprep.mubr.f32.mxu0 0.0
    %216 = vmatmul.mubr.f32.gmra.mxu0 %v124
    %v217 = vpop.f32.mrf.mxu0
    %v218 = vadd.f32 %v145, %v217
    %v219 = vpop.f32.mrf.mxu0
    %220 = vdwg.mxu0
    %v221 = vmax.f32 %v213, 0.0
    %v222 = vmax.f32 %v218, 0.0
    %v223 = vld [vmem:[#allocation2 + $0x110] sm:$0xff]
    %v224 = vld [vmem:[#allocation2 + $0x118] sm:$0xff]
    %v225 = vld [vmem:[#allocation2 + $0x120] sm:$0xff]
    %v226 = vld [vmem:[#allocation2 + $0x128] sm:$0xff]
    %v227 = vld [vmem:[#allocation2 + $0x130] sm:$0xff]
    %v228 = vld [vmem:[#allocation2 + $0x138] sm:$0xff]
    %v229 = vld [vmem:[#allocation2 + $0x140] sm:$0xff]
    %v230 = vld [vmem:[#allocation2 + $0x148] sm:$0xff]
    %v231 = vld [vmem:[#allocation2 + $0x150] sm:$0xff]
    %v232 = vld [vmem:[#allocation2 + $0x158] sm:$0xff]
    %v233 = vld [vmem:[#allocation2 + $0x160] sm:$0xff]
    %v234 = vld [vmem:[#allocation2 + $0x168] sm:$0xff]
    %v235 = vld [vmem:[#allocation2 + $0x170] sm:$0xff]
    %v236 = vld [vmem:[#allocation2 + $0x178] sm:$0xff]
    %v237 = vld [vmem:[#allocation2 + $0x180] sm:$0xff]
    %v238 = vld [vmem:[#allocation2 + $0x188] sm:$0xff]
    %v239 = vld [vmem:[#allocation2 + $0x190] sm:$0x1]
    %v240 = vlaneseq
    %v241 = vshrl.u32 %v240, 7
    %v242 = vsub.s32 0, %v241
    %v243 = vrot.slane %v239, %v242
    %244 = vmatprep.subr.mxu0 0.0
    %245 = vmatpush1.msra.mxu0 %v238
    %246 = vmatprep.subr.mxu0 0.0
    %247 = vmatpush1.msra.mxu0 %v237
    %248 = vmatprep.subr.mxu0 0.0
    %249 = vmatpush1.msra.mxu0 %v236
    %250 = vmatprep.subr.mxu0 0.0
    %251 = vmatpush1.msra.mxu0 %v235
    %252 = vmatprep.subr.mxu0 0.0
    %253 = vmatpush1.msra.mxu0 %v234
    %254 = vmatprep.subr.mxu0 0.0
    %255 = vmatpush1.msra.mxu0 %v233
    %256 = vmatprep.subr.mxu0 0.0
    %257 = vmatpush1.msra.mxu0 %v232
    %258 = vmatprep.subr.mxu0 0.0
    %259 = vmatpush1.msra.mxu0 %v231
    %260 = vmatprep.subr.mxu0 0.0
    %261 = vmatpush1.msra.mxu0 %v230
    %262 = vmatprep.subr.mxu0 0.0
    %263 = vmatpush1.msra.mxu0 %v229
    %264 = vmatprep.subr.mxu0 0.0
    %265 = vmatpush1.msra.mxu0 %v228
    %266 = vmatprep.subr.mxu0 0.0
    %267 = vmatpush1.msra.mxu0 %v227
    %268 = vmatprep.subr.mxu0 0.0
    %269 = vmatpush1.msra.mxu0 %v226
    %270 = vmatprep.subr.mxu0 0.0
    %271 = vmatpush1.msra.mxu0 %v225
    %272 = vmatprep.subr.mxu0 0.0
    %273 = vmatpush1.msra.mxu0 %v224
    %274 = vmatprep.subr.mxu0 0.0
    %275 = vmatpush1.msra.mxu0 %v223
    %276 = vmatprep.subr.mxu0 0.0
    %277 = vmatpush2.msra.mxu0 0.0
    %278 = vmatprep.subr.mxu0 0.0
    %279 = vmatpush2.msra.mxu0 0.0
    %280 = vmatprep.subr.mxu0 0.0
    %281 = vmatpush2.msra.mxu0 0.0
    %282 = vmatprep.subr.mxu0 0.0
    %283 = vmatpush2.msra.mxu0 0.0
    %284 = vmatprep.subr.mxu0 0.0
    %285 = vmatpush2.msra.mxu0 0.0
    %286 = vmatprep.subr.mxu0 0.0
    %287 = vmatpush2.msra.mxu0 0.0
    %288 = vmatprep.subr.mxu0 0.0
    %289 = vmatpush2.msra.mxu0 0.0
    %290 = vmatprep.subr.mxu0 0.0
    %291 = vmatpush2.msra.mxu0 0.0
    %292 = vmatprep.subr.mxu0 0.0
    %293 = vmatpush2.msra.mxu0 0.0
    %294 = vmatprep.subr.mxu0 0.0
    %295 = vmatpush2.msra.mxu0 0.0
    %296 = vmatprep.subr.mxu0 0.0
    %297 = vmatpush2.msra.mxu0 0.0
    %298 = vmatprep.subr.mxu0 0.0
    %299 = vmatpush2.msra.mxu0 0.0
    %300 = vmatprep.subr.mxu0 0.0
    %301 = vmatpush2.msra.mxu0 0.0
    %302 = vmatprep.subr.mxu0 0.0
    %303 = vmatpush2.msra.mxu0 0.0
    %304 = vmatprep.subr.mxu0 0.0
    %305 = vmatpush2.msra.mxu0 0.0
    %306 = vmatprep.subr.mxu0 0.0
    %307 = vmatpush2.msra.mxu0 0.0
    %308 = vmatprep.mubr.f32.mxu0 0.0
    %309 = vmatmul.mubr.f32.gmra.mxu0 %v221
    %v310 = vpop.f32.mrf.mxu0
    %v311 = vadd.f32 %v243, %v310
    %v312 = vpop.f32.mrf.mxu0
    %313 = vmatprep.mubr.f32.mxu0 0.0
    %314 = vmatmul.mubr.f32.gmra.mxu0 %v222
    %v315 = vpop.f32.mrf.mxu0
    %v316 = vadd.f32 %v243, %v315
    %v317 = vpop.f32.mrf.mxu0
    %318 = vdwg.mxu0
    %319 = vst [vmem:[%s2] sm:$0xff] %v311
    %320 = vst [vmem:[%s2 + $0x8] sm:$0xff] %v316
    // Predicated region
    $region14: #{_forward_impl.1} parent=1 // pred_check
      _
    $region15: #{_forward_impl.1} parent=1 // pred_check_branch
      %322 = sbr.rel (0) target = $region17
    $region16: #{_forward_impl.1} parent=1 // pred_region
      _
    $region17: #{_forward_impl.1} parent=1 // pred_fallthru
      _
    // Predicated region
    $region18: #{_forward_impl.1} parent=1 // pred_check
      _
    $region19: #{_forward_impl.1} parent=1 // pred_check_branch
      %324 = sbr.rel (0) target = $region21
    $region20: #{_forward_impl.1} parent=1 // pred_region
      _
    $region21: #{_forward_impl.1} parent=1 // pred_fallthru
      _
    %325 = vsyncpa [#allocation3], 1

</llo_original>
